<compile_context>
chip_gen: v6e
topology: v6e:2x2x1
jax: 0.10.0
libtpu: 0.0.40
codegen_flags: <defaults>
</compile_context>

<pallas_src>
import jax
import jax.numpy as jnp
from jax import lax
from jax.experimental import pallas as pl
from jax.experimental.pallas import tpu as pltpu

_EPS = 1e-12  # torch F.normalize default eps

# Conservative total VMEM budget for (in + out) x double-buffering.
_VMEM_BLOCK_BUDGET = 32 * 1024 * 1024
# Scoped VMEM limit handed to Mosaic (default is 16/32 MiB depending on chip).
_VMEM_LIMIT_BYTES = 48 * 1024 * 1024
# Below this total size, Pallas launch overhead dominates -> plain XLA.
_DEFAULT_MIN_PALLAS_BYTES = 1 << 20


def _l2_normalize_kernel(x_ref, o_ref):
    # x_ref / o_ref: (tile_rows, C) block in VMEM.
    x = x_ref[...].astype(jnp.float32)
    sq = jnp.sum(x * x, axis=-1, keepdims=True)            # (tile_rows, 1)
    # max(sqrt(s), eps) == sqrt(max(s, eps^2)); 1e-24 is representable in f32.
    inv = lax.rsqrt(jnp.maximum(sq, _EPS * _EPS))           # EUP rsqrt, no divide
    o_ref[...] = (x * inv).astype(o_ref.dtype)


def _normalize_ref(x):
    """Plain-XLA reference / fast path (same clamp semantics as torch)."""
    xf = x.astype(jnp.float32)
    sq = jnp.sum(xf * xf, axis=-1, keepdims=True)
    inv = lax.rsqrt(jnp.maximum(sq, _EPS * _EPS))
    return (xf * inv).astype(x.dtype)


def _choose_tile_rows(rows, C, dtype):
    itemsize = jnp.dtype(dtype).itemsize
    # bf16/fp16 pack 2 rows per sublane -> 16-row alignment; f32 -> 8.
    row_align = 16 if itemsize < 4 else 8
    # (in + out) blocks, each double-buffered -> 4 copies resident.
    max_rows = max(row_align, _VMEM_BLOCK_BUDGET // (4 * C * itemsize))
    tile = min(2048, max_rows)
    tile = (tile // row_align) * row_align
    # Don't request a block bigger than the (alignment-rounded) row count.
    rows_up = ((rows + row_align - 1) // row_align) * row_align
    tile = min(tile, rows_up)
    return max(tile, row_align)


def l2_normalize_last_dim(emb, *, tile_rows=None,
                          min_pallas_bytes=_DEFAULT_MIN_PALLAS_BYTES):
    """L2-normalize `emb` along its last axis (Pallas TPU kernel).

    emb: (T, P, C) array. Returns array of same shape/dtype.
    Tables smaller than `min_pallas_bytes` take a plain-XLA fast path
    (pass 0 to force the Pallas kernel).
    """
    T, P, C = emb.shape
    rows = T * P
    itemsize = jnp.dtype(emb.dtype).itemsize

    if rows * C * itemsize < min_pallas_bytes:
        # Launch/pipeline overhead dwarfs compute for tiny tables.
        return _normalize_ref(emb)

    if tile_rows is None:
        tile_rows = _choose_tile_rows(rows, C, emb.dtype)

    x2d = emb.reshape(rows, C)
    grid = (pl.cdiv(rows, tile_rows),)   # ragged last block is masked by Pallas

    # TODO(synk): for production tables with C < 128, repack so the stored
    # last dim is a multiple of 128 (lane-dense stores); C >= 128 needs nothing.
    out2d = pl.pallas_call(
        _l2_normalize_kernel,
        out_shape=jax.ShapeDtypeStruct((rows, C), emb.dtype),
        grid=grid,
        in_specs=[pl.BlockSpec((tile_rows, C), lambda i: (i, 0))],
        out_specs=pl.BlockSpec((tile_rows, C), lambda i: (i, 0)),
        compiler_params=pltpu.CompilerParams(
            dimension_semantics=("parallel",),   # lets v7x shard rows over 2 TCs
            vmem_limit_bytes=_VMEM_LIMIT_BYTES,
        ),
    )(x2d)

    return out2d.reshape(T, P, C)


class NekoClassEmbeddingNG:
    """JAX port of neko_class_embeddingNG (synthetic deterministic init)."""

    def __init__(self, transcriptions, n_parts, channel, key, *,
                 min_pallas_bytes=_DEFAULT_MIN_PALLAS_BYTES):
        self.trans = transcriptions
        self.min_pallas_bytes = min_pallas_bytes
        # torch.rand -> uniform [0, 1)  (RNG stream differs from torch)
        self.emb = jax.random.uniform(
            key, (len(transcriptions), n_parts, channel), dtype=jnp.float32
        )

    def forward(self):
        return (
            l2_normalize_last_dim(self.emb,
                                  min_pallas_bytes=self.min_pallas_bytes),
            self.trans,
        )


if __name__ == "__main__":
    key = jax.random.PRNGKey(0)

    # Small, module-consistent shapes: 8 transcription classes, 4 parts, 32 channels.
    transcriptions = [f"cls_{i}" for i in range(8)]
    n_parts = 4
    channel = 32

    # Force the Pallas path (min_pallas_bytes=0) so the kernel is exercised
    # even at this tiny demo size.
    module = NekoClassEmbeddingNG(transcriptions, n_parts, channel, key,
                                  min_pallas_bytes=0)
    normed, trans = module.forward()
    normed = jax.block_until_ready(normed)

    # Reference check (same clamp semantics as torch F.normalize eps=1e-12).
    ref = module.emb / jnp.maximum(
        jnp.linalg.norm(module.emb, axis=-1, keepdims=True), _EPS
    )
    assert normed.shape == (len(transcriptions), n_parts, channel)
    assert trans is transcriptions
    assert jnp.allclose(normed, ref, atol=1e-5, rtol=1e-5)

    # Fast path (plain-XLA) should agree as well.
    fast = jax.block_until_ready(
        l2_normalize_last_dim(module.emb, min_pallas_bytes=_DEFAULT_MIN_PALLAS_BYTES)
    )
    assert jnp.allclose(fast, ref, atol=1e-5, rtol=1e-5)

    print("KERNEL_OK")
</pallas_src>

<mosaic_0001>
module attributes {stable_mosaic.version = 11 : i64} {
  func.func @_l2_normalize_kernel(%arg0: i32, %arg1: memref<32x32xf32, #tpu.memory_space<vmem>>, %arg2: memref<32x32xf32, #tpu.memory_space<vmem>>) attributes {dimension_semantics = [#tpu.dimension_semantics<parallel>], iteration_bounds = array<i64: 1>, scalar_prefetch = 0 : i64, scratch_operands = 0 : i64, tpu.core_type = #tpu.core_type<tc>, window_params = [{transform_indices = @transform_0, window_bounds = array<i64: 32, 32>}, {transform_indices = @transform_1, window_bounds = array<i64: 32, 32>}]} {
    %c0 = arith.constant 0 : index
    %c0_0 = arith.constant 0 : index
    %0 = vector.load %arg1[%c0, %c0_0] : memref<32x32xf32, #tpu.memory_space<vmem>>, vector<32x32xf32>
    %1 = arith.mulf %0, %0 : vector<32x32xf32>
    %cst = arith.constant dense<0.000000e+00> : vector<32xf32>
    %2 = vector.multi_reduction <add>, %1, %cst [1] : vector<32x32xf32> to vector<32xf32>
    %3 = vector.shape_cast %2 : vector<32xf32> to vector<32x1xf32>
    %cst_1 = arith.constant 1.000000e-24 : f32
    %4 = vector.broadcast %cst_1 : f32 to vector<32x1xf32>
    %5 = arith.maximumf %3, %4 : vector<32x1xf32>
    %6 = math.rsqrt %5 : vector<32x1xf32>
    %7 = vector.broadcast %6 : vector<32x1xf32> to vector<32x32xf32>
    %8 = arith.mulf %0, %7 : vector<32x32xf32>
    %c0_2 = arith.constant 0 : index
    %c0_3 = arith.constant 0 : index
    %9 = vector.load %arg2[%c0_2, %c0_3] : memref<32x32xf32, #tpu.memory_space<vmem>>, vector<32x32xf32>
    tpu.vector_store %arg2[%c0_2, %c0_3], %8 {strides = array<i32>} : memref<32x32xf32, #tpu.memory_space<vmem>>, vector<32x32xf32>,
    return
  }
  func.func @transform_0(%arg0: i32) -> (i32, i32) {
    %c0_i32 = arith.constant 0 : i32
    %c0_i32_0 = arith.constant 0 : i32
    return %arg0, %c0_i32 : i32, i32
  }
  func.func @transform_1(%arg0: i32) -> (i32, i32) {
    %c0_i32 = arith.constant 0 : i32
    %c0_i32_0 = arith.constant 0 : i32
    return %arg0, %c0_i32 : i32, i32
  }
}

</mosaic_0001>

<llo_original>
// kernel: tpu_custom_call.1
$region0: #{tpu_custom_call.1}
  #allocation0 [shape = 'u32[]', space=smem, size = 0x4, offset = 0x4, fixed_abs, tag = 'smem constant byte address 0x4 - core index']
  #allocation1 [shape = 'u32[144,128]{1,0:T(1,128)}', space=vmem, size = 0x12000, scoped, tag = 'internal scratch']
  %s0 = inlined_call_operand.hbm [shape: f32[32,32], index: 0, kind: input, shape index: {}]
  %s1 = inlined_call_operand.hbm [shape: f32[32,32], index: 1, kind: output, shape index: {}]
  %s2 = sld [smem:[#allocation0]]
  $region18: #{tpu_custom_call.1} parent=0
    _
  %s4 = ssub.s32 1, %s2
  %s5 = scalar_select 0, %s4, %s2
  $region1: #{tpu_custom_call.1} parent=0
    #allocation2 [shape = 'u8[16384]{0}', space=vmem, size = 0x4000, scoped, tag = 'input window, operand 0, single buffered']
    #allocation3 [shape = 's32[1]{0}', space=sflag, size = 0x4, scoped, tag = 'scoped memory for tpu_custom_call.1']
    #allocation4 [shape = 's32[1]{0}', space=sflag, size = 0x4, scoped, tag = 'scoped memory for tpu_custom_call.1']
    #allocation5 [shape = 'u8[16384]{0}', space=vmem, size = 0x4000, scoped, tag = 'output window, operand 0, single buffered']
    %6 = vsyncpa [#allocation3], 0
    %7 = vsyncpa [#allocation4], 0
    // Predicated region
    $region2: #{tpu_custom_call.1} parent=1 // pred_check
      _
    $region3: #{tpu_custom_call.1} parent=1 // pred_check_branch
      %9 = sbr.rel (0) target = $region5
    $region4: #{tpu_custom_call.1} parent=1 // pred_region
      %s11 = ssub.s32 512, 512
      %12 = vsyncadd [#allocation3], %s11
      %s13 = sshll.u32 [#allocation2], 4
      %s14 = int_to_ptr.vmem [resolvable:$true] %s13
      %19 = dma.hbm_to_vmem [thread:$0]  %s0, 512, %s14, [#allocation3], 128, 128, 8
    $region5: #{tpu_custom_call.1} parent=1 // pred_fallthru
      _
    // Predicated region
    $region6: #{tpu_custom_call.1} parent=1 // pred_check
      _
    $region7: #{tpu_custom_call.1} parent=1 // pred_check_branch
      %21 = sbr.rel (0) target = $region9
    $region8: #{tpu_custom_call.1} parent=1 // pred_region
      %22 = dma.done [#allocation3], 512
    $region9: #{tpu_custom_call.1} parent=1 // pred_fallthru
      _
    %v23 = vld [vmem:[#allocation2] sm:$0xff]
    %v24 = vld [vmem:[#allocation2 + $0x8] sm:$0xff]
    %v25 = vld [vmem:[#allocation2 + $0x10] sm:$0xff]
    %v26 = vld [vmem:[#allocation2 + $0x18] sm:$0xff]
    %v27 = vmul.f32 %v23, %v23
    %v28 = vmul.f32 %v24, %v24
    %v29 = vmul.f32 %v25, %v25
    %v30 = vmul.f32 %v26, %v26
    %vm31 = vcmask 261120
    %v32 = vsel %vm31, %v27, 0.0
    %33 = vadd.xlane.f32.xlu0 %v32
    %v34 = vpop.xlane.xlu0 %33
    %v35 = vsel %vm31, %v28, 0.0
    %36 = vadd.xlane.f32.xlu0 %v35
    %v37 = vpop.xlane.xlu0 %36
    %v38 = vsel %vm31, %v29, 0.0
    %39 = vadd.xlane.f32.xlu0 %v38
    %v40 = vpop.xlane.xlu0 %39
    %v41 = vsel %vm31, %v30, 0.0
    %42 = vadd.xlane.f32.xlu0 %v41
    %v43 = vpop.xlane.xlu0 %42
    %v44 = vmax.f32 %v34, 1e-24
    %v45 = vmax.f32 %v37, 1e-24
    %v46 = vmax.f32 %v40, 1e-24
    %v47 = vmax.f32 %v43, 1e-24
    %v48 = vrsqrt.pop %v44
    %v49 = vrsqrt.pop %v45
    %v50 = vrsqrt.pop %v46
    %v51 = vrsqrt.pop %v47
    %v52 = vmul.f32 %v23, %v48
    %v53 = vmul.f32 %v24, %v49
    %v54 = vmul.f32 %v25, %v50
    %v55 = vmul.f32 %v26, %v51
    %56 = vst.msk [vmem:[#allocation5] sm:$0xff] %vm31, %v52
    %57 = vst.msk [vmem:[#allocation5 + $0x8] sm:$0xff] %vm31, %v53
    %58 = vst.msk [vmem:[#allocation5 + $0x10] sm:$0xff] %vm31, %v54
    %59 = vst.msk [vmem:[#allocation5 + $0x18] sm:$0xff] %vm31, %v55
    // Predicated region
    $region10: #{tpu_custom_call.1} parent=1 // pred_check
      _
    $region11: #{tpu_custom_call.1} parent=1 // pred_check_branch
      %61 = sbr.rel (0) target = $region13
    $region12: #{tpu_custom_call.1} parent=1 // pred_region
      %s63 = ssub.s32 512, 512
      %64 = vsyncadd [#allocation4], %s63
      %s65 = sshll.u32 [#allocation5], 4
      %s66 = int_to_ptr.vmem [resolvable:$true] %s65
      %71 = dma.vmem_to_hbm [thread:$0]  %s66, 512, %s1, [#allocation4], 128, 128, 8
    $region13: #{tpu_custom_call.1} parent=1 // pred_fallthru
      _
    // Predicated region
    $region14: #{tpu_custom_call.1} parent=1 // pred_check
      _
    $region15: #{tpu_custom_call.1} parent=1 // pred_check_branch
      %73 = sbr.rel (0) target = $region17
    $region16: #{tpu_custom_call.1} parent=1 // pred_region
      %74 = dma.done [#allocation4], 512
    $region17: #{tpu_custom_call.1} parent=1 // pred_fallthru
      _
    %75 = vsyncpa [#allocation3], 1
    %76 = vsyncpa [#allocation4], 1

</llo_original>
